<compile_context>
chip_gen: v7x
topology: tpu7x:2x2x1
jax: 0.10.0
libtpu: 0.0.40
codegen_flags: <defaults>
</compile_context>

<pallas_src>
import jax
import jax.numpy as jnp
from jax.experimental import pallas as pl
from jax.experimental.pallas import tpu as pltpu


# ---------------- tiling policy ----------------

_LANE_WIDTH = 512            # lane-dense slab width (multiple of 128)
_MIN_TILE_BYTES = 1 << 20    # below this, use a single block (no step overhead)
_MAX_BLOCK_BYTES = 16 << 20  # hard cap on one VMEM block; beyond -> XLA fallback


def _target_block_bytes():
    """Per-buffer block-byte budget by TPU generation (fits scoped-VMEM defaults)."""
    try:
        kind = jax.devices()[0].device_kind.lower()
    except Exception:  # pragma: no cover - non-TPU / query failure
        kind = ""
    # v5*: 2 MiB blocks (8 MiB with in+out double-buffering, under the 16 MiB
    # scoped-VMEM default).  v6e / v7x: 4 MiB blocks (16 MiB total, under the
    # 32 MiB scoped default and well under v7x's 64 MiB physical VMEM).
    return (2 << 20) if "v5" in kind else (4 << 20)


# ---------------- Pallas kernel (backward only) ----------------

def _neg_scale_kernel(lam_ref, g_ref, o_ref):
    # lambda arrives in SMEM; the scalar read is on the free scalar path.
    neg_lam = -lam_ref[0]
    o_ref[...] = (g_ref[...].astype(jnp.float32) * neg_lam).astype(o_ref.dtype)


def _as_2d(g):
    """Copy-free (row-major) reshape of g to a 2-D slab."""
    n = g.size
    if n % _LANE_WIDTH == 0:
        return g.reshape(n // _LANE_WIDTH, _LANE_WIDTH)   # lane-dense fast path
    if g.ndim >= 2:
        return g.reshape(-1, g.shape[-1])                 # ragged: keep last dim
    return g.reshape(n, 1)                                # 0-D / 1-D ragged


def _choose_block_rows(rows, row_bytes):
    total = rows * row_bytes
    if total <= _MIN_TILE_BYTES or rows <= 8:
        return rows                                   # single block, zero overhead
    br = max(1, _target_block_bytes() // row_bytes)   # byte budget per block
    br = min(br, pl.cdiv(rows, 2))                    # >= 2 steps -> both v7x cores
    br = max(8, (br // 8) * 8)                        # (8, 128) sublane rule
    return min(br, rows)


def _reverse_grad_pallas(g, lam):
    """dx = -lam * g via a tiled, HBM-aliased Pallas kernel."""
    if g.size == 0:
        return (-lam).astype(g.dtype) * g

    g2d = _as_2d(g)
    rows, cols = g2d.shape
    row_bytes = cols * g2d.dtype.itemsize
    block_rows = _choose_block_rows(rows, row_bytes)

    if block_rows * row_bytes > _MAX_BLOCK_BYTES:
        # TODO(synk): pathological single-huge-row ragged shape; let XLA handle it.
        return (-lam).astype(g.dtype) * g

    dx2d = pl.pallas_call(
        _neg_scale_kernel,
        out_shape=jax.ShapeDtypeStruct((rows, cols), g2d.dtype),
        grid_spec=pl.GridSpec(
            grid=(pl.cdiv(rows, block_rows),),
            in_specs=[
                pl.BlockSpec(memory_space=pltpu.MemorySpace.SMEM),   # (1,) lambda
                pl.BlockSpec((block_rows, cols), lambda i: (i, 0)),  # grad tile
            ],
            out_specs=pl.BlockSpec((block_rows, cols), lambda i: (i, 0)),
        ),
        compiler_params=pltpu.CompilerParams(
            dimension_semantics=("parallel",),   # shards the grid over v7x's 2 TCs
            vmem_limit_bytes=32 << 20,           # explicit; safe on v5e/v6e/v7x
        ),
        input_output_aliases={1: 0},             # write dx over g's HBM buffer
    )(lam.reshape(1), g2d)

    return dx2d.reshape(g.shape)


# ---------------- GradientReversal (custom_vjp) ----------------

@jax.custom_vjp
def _grl_pallas(x, lam):
    return x                                   # forward is the identity


def _grl_pallas_fwd(x, lam):
    return x, lam                              # residual: lambda only


def _grl_pallas_bwd(lam, g):
    return _reverse_grad_pallas(g, lam), jnp.zeros((), jnp.float32)


_grl_pallas.defvjp(_grl_pallas_fwd, _grl_pallas_bwd)


@jax.custom_vjp
def _grl_fused(x, lam):
    return x


def _grl_fused_fwd(x, lam):
    return x, lam


def _grl_fused_bwd(lam, g):
    # Plain scale — XLA fuses this into the adjacent backward op for free.
    return (-lam).astype(g.dtype) * g, jnp.zeros((), jnp.float32)


_grl_fused.defvjp(_grl_fused_fwd, _grl_fused_bwd)


def gradient_reversal(x, lambda_=1.0, *, use_pallas=True):
    lam = jnp.asarray(lambda_, dtype=jnp.float32)
    return (_grl_pallas if use_pallas else _grl_fused)(x, lam)


class GradientReversal:
    """JAX/Pallas equivalent of the PyTorch GradientReversal module."""

    def __init__(self, lambda_=1.0, use_pallas=True):
        self.lambda_ = lambda_
        self.use_pallas = use_pallas

    def __call__(self, x):
        return gradient_reversal(x, self.lambda_, use_pallas=self.use_pallas)


# ---------------- demo ----------------

if __name__ == "__main__":
    key = jax.random.PRNGKey(0)

    # --- main case: NCHW, same as the PyTorch module ---
    x = jax.random.normal(key, (2, 4, 16, 16), dtype=jnp.float32)
    grl = GradientReversal(lambda_=1.0)

    y = jax.block_until_ready(grl(x))
    assert y.shape == x.shape and y.dtype == x.dtype
    assert bool(jnp.allclose(y, x)), "forward must be identity"

    g = jax.block_until_ready(jax.grad(lambda z: jnp.sum(grl(z) * 2.0))(x))
    assert bool(jnp.allclose(g, -2.0 * jnp.ones_like(x))), "grad must be reversed"

    # --- lane-dense, multi-block path (2 MiB slab -> >= 2 grid steps) ---
    x2 = jax.random.normal(jax.random.PRNGKey(1), (8, 16, 64, 64), jnp.float32)
    grl2 = GradientReversal(lambda_=0.5)
    g2 = jax.block_until_ready(jax.grad(lambda z: jnp.sum(grl2(z) * 2.0))(x2))
    assert bool(jnp.allclose(g2, -1.0 * jnp.ones_like(x2)))

    # --- ragged size, multi-block + partial last block + aliasing (no pad path) ---
    x3 = jax.random.normal(jax.random.PRNGKey(2), (30, 100, 100), jnp.float32)
    grl3 = GradientReversal(lambda_=2.0)
    g3 = jax.block_until_ready(jax.grad(lambda z: jnp.sum(grl3(z)))(x3))
    assert bool(jnp.allclose(g3, -2.0 * jnp.ones_like(x3)))

    # --- tiny odd element count (single ragged block) ---
    x4 = jax.random.normal(jax.random.PRNGKey(3), (3, 5, 7, 11), jnp.float32)
    grl4 = GradientReversal(lambda_=2.0)
    g4 = jax.block_until_ready(jax.grad(lambda z: jnp.sum(grl4(z)))(x4))
    assert bool(jnp.allclose(g4, -2.0 * jnp.ones_like(x4)))

    # --- bf16 gradients ---
    x5 = jax.random.normal(jax.random.PRNGKey(4), (4, 128, 128)).astype(jnp.bfloat16)
    grl5 = GradientReversal(lambda_=0.5)
    g5 = jax.block_until_ready(jax.grad(lambda z: jnp.sum(grl5(z)))(x5))
    assert bool(jnp.allclose(g5.astype(jnp.float32), -0.5))

    # --- fused (non-Pallas) backward path for XLA-fusable training graphs ---
    g6 = jax.block_until_ready(
        jax.grad(lambda z: jnp.sum(gradient_reversal(z, 1.5, use_pallas=False)))(x))
    assert bool(jnp.allclose(g6, -1.5 * jnp.ones_like(x)))

    print("KERNEL_OK")
</pallas_src>

<mosaic_0001>
module attributes {stable_mosaic.version = 11 : i64} {
  func.func @_neg_scale_kernel(%arg0: i32, %arg1: memref<1xf32, #tpu.memory_space<smem>>, %arg2: memref<4x512xf32, #tpu.memory_space<vmem>>, %arg3: memref<4x512xf32, #tpu.memory_space<vmem>>) attributes {dimension_semantics = [#tpu.dimension_semantics<parallel>], iteration_bounds = array<i64: 1>, scalar_prefetch = 0 : i64, scratch_operands = 0 : i64, tpu.core_type = #tpu.core_type<tc>, window_params = [{transform_indices = @transform_0, window_bounds = array<i64: 1>}, {transform_indices = @transform_1, window_bounds = array<i64: 4, 512>}, {transform_indices = @transform_2, window_bounds = array<i64: 4, 512>}]} {
    %c0 = arith.constant 0 : index
    %0 = memref.load %arg1[%c0] : memref<1xf32, #tpu.memory_space<smem>>
    %cst = arith.constant 0.000000e+00 : f32
    %1 = arith.subf %cst, %0 : f32
    %c0_0 = arith.constant 0 : index
    %c0_1 = arith.constant 0 : index
    %2 = vector.load %arg2[%c0_0, %c0_1] : memref<4x512xf32, #tpu.memory_space<vmem>>, vector<4x512xf32>
    %3 = vector.broadcast %1 : f32 to vector<4x512xf32>
    %4 = arith.mulf %2, %3 : vector<4x512xf32>
    %c0_2 = arith.constant 0 : index
    %c0_3 = arith.constant 0 : index
    %5 = vector.load %arg3[%c0_2, %c0_3] : memref<4x512xf32, #tpu.memory_space<vmem>>, vector<4x512xf32>
    tpu.vector_store %arg3[%c0_2, %c0_3], %4 {strides = array<i32>} : memref<4x512xf32, #tpu.memory_space<vmem>>, vector<4x512xf32>,
    return
  }
  func.func @transform_0(%arg0: i32) -> i32 {
    %c0_i32 = arith.constant 0 : i32
    %c0_i32_0 = arith.constant 0 : i32
    return %c0_i32 : i32
  }
  func.func @transform_1(%arg0: i32) -> (i32, i32) {
    %c0_i32 = arith.constant 0 : i32
    %c0_i32_0 = arith.constant 0 : i32
    return %arg0, %c0_i32 : i32, i32
  }
  func.func @transform_2(%arg0: i32) -> (i32, i32) {
    %c0_i32 = arith.constant 0 : i32
    %c0_i32_0 = arith.constant 0 : i32
    return %arg0, %c0_i32 : i32, i32
  }
}

</mosaic_0001>

<llo_original>
// kernel: tpu_custom_call.1
$region0: #{tpu_custom_call.1}
  #allocation0 [shape = 'u32[]', space=smem, size = 0x4, offset = 0x4, fixed_abs, tag = 'smem constant byte address 0x4 - core index']
  #allocation1 [shape = 'u32[144,128]{1,0:T(1,128)}', space=vmem, size = 0x12000, scoped, tag = 'internal scratch']
  #allocation2 [shape = 'f32[1]{0:T(128)S(6)}', space=smem, size = 0x200, scoped, tag = 'scoped memory for tpu_custom_call.1']
  %s0 = inlined_call_operand.<no memory space> [shape: f32[1], index: 0, kind: input, shape index: {}]
  %s1 = inlined_call_operand.hbm [shape: f32[4,512], index: 1, kind: input, shape index: {}, may-alias: {1,2}]
  %s2 = inlined_call_operand.hbm [shape: f32[4,512], index: 2, kind: output, shape index: {}, may-alias: {1,2}]
  %s3 = sld [smem:[#allocation0]]
  $region22: #{tpu_custom_call.1} parent=0
    _
  %s5 = ssub.s32 1, %s3
  %s6 = scalar_select 0, %s5, %s3
  %7 = sst [smem:[#allocation2]] %s0
  $region1: #{tpu_custom_call.1} parent=0
    #allocation3 [shape = 'u8[8192]{0}', space=vmem, size = 0x2000, scoped, tag = 'input window, operand 1, single buffered']
    #allocation4 [shape = 's32[1]{0}', space=sflag, size = 0x4, scoped, tag = 'scoped memory for tpu_custom_call.1']
    #allocation5 [shape = 's32[1]{0}', space=sflag, size = 0x4, scoped, tag = 'scoped memory for tpu_custom_call.1']
    #allocation6 [shape = 'u8[8192]{0}', space=vmem, size = 0x2000, scoped, tag = 'output window, operand 0, single buffered']
    %8 = vsyncpa [#allocation4], 0
    %9 = vsyncpa [#allocation5], 0
    // Predicated region
    $region2: #{tpu_custom_call.1} parent=1 // pred_check
      _
    $region3: #{tpu_custom_call.1} parent=1 // pred_check_branch
      %11 = sbr.rel (0) target = $region5
    $region4: #{tpu_custom_call.1} parent=1 // pred_region
      _
    $region5: #{tpu_custom_call.1} parent=1 // pred_fallthru
      _
    // Predicated region
    $region6: #{tpu_custom_call.1} parent=1 // pred_check
      _
    $region7: #{tpu_custom_call.1} parent=1 // pred_check_branch
      %13 = sbr.rel (0) target = $region9
    $region8: #{tpu_custom_call.1} parent=1 // pred_region
      %s15 = ssub.s32 256, 256
      %16 = vsyncadd [#allocation4], %s15
      %s18 = sshll.u32 [#allocation3], 4
      %s19 = int_to_ptr.vmem [resolvable:$true] %s18
      %21 = dma.hbm_to_vmem [thread:$0]  %s1, 256, %s19, [#allocation4]
    $region9: #{tpu_custom_call.1} parent=1 // pred_fallthru
      _
    // Predicated region
    $region10: #{tpu_custom_call.1} parent=1 // pred_check
      _
    $region11: #{tpu_custom_call.1} parent=1 // pred_check_branch
      %23 = sbr.rel (0) target = $region13
    $region12: #{tpu_custom_call.1} parent=1 // pred_region
      %24 = dma.done [#allocation4], 256
    $region13: #{tpu_custom_call.1} parent=1 // pred_fallthru
      _
    %s25 = sld [smem:[#allocation2]]
    %s26 = ssub.f32 0.0, %s25
    %v27 = vld [vmem:[#allocation3] sm:$0xff]
    %v28 = vld [vmem:[#allocation3 + $0x8] sm:$0xff]
    %v29 = vstv %s26
    %v30 = vmul.f32 %v27, %v29
    %v31 = vmul.f32 %v28, %v29
    %32 = vst [vmem:[#allocation6] sm:$0xff] %v30
    %33 = vst [vmem:[#allocation6 + $0x8] sm:$0xff] %v31
    // Predicated region
    $region14: #{tpu_custom_call.1} parent=1 // pred_check
      _
    $region15: #{tpu_custom_call.1} parent=1 // pred_check_branch
      %35 = sbr.rel (0) target = $region17
    $region16: #{tpu_custom_call.1} parent=1 // pred_region
      %s37 = ssub.s32 256, 256
      %38 = vsyncadd [#allocation5], %s37
      %s40 = sshll.u32 [#allocation6], 4
      %s41 = int_to_ptr.vmem [resolvable:$true] %s40
      %43 = dma.vmem_to_hbm [thread:$0]  %s41, 256, %s2, [#allocation5]
    $region17: #{tpu_custom_call.1} parent=1 // pred_fallthru
      _
    // Predicated region
    $region18: #{tpu_custom_call.1} parent=1 // pred_check
      _
    $region19: #{tpu_custom_call.1} parent=1 // pred_check_branch
      %45 = sbr.rel (0) target = $region21
    $region20: #{tpu_custom_call.1} parent=1 // pred_region
      %46 = dma.done [#allocation5], 256
    $region21: #{tpu_custom_call.1} parent=1 // pred_fallthru
      _
    %47 = vsyncpa [#allocation4], 1
    %48 = vsyncpa [#allocation5], 1

</llo_original>
